<compile_context>
chip_gen: v6e
topology: v6e:2x2x1
jax: 0.10.0
libtpu: 0.0.40
codegen_flags: <defaults>
</compile_context>

<pallas_src>
import functools

import jax
import jax.numpy as jnp
from jax.experimental import pallas as pl
from jax.experimental.pallas import tpu as pltpu

_EPS = 1e-5
_MIB = 1024 * 1024
_MAX_TILE_HW = 128 * 1024          # sanity cap; byte budget usually binds first


def _biasfree_ln_kernel(x_ref, w_ref, o_ref):
    # x_ref: (TB, C, T) block -- C on sublanes, spatial T on lanes.
    x = x_ref[...].astype(jnp.float32)
    inv_c = jnp.float32(1.0 / x.shape[1])
    s1 = jnp.sum(x, axis=1, keepdims=True)          # (TB, 1, T)
    s2 = jnp.sum(x * x, axis=1, keepdims=True)      # (TB, 1, T), independent of s1
    mu = s1 * inv_c
    var = jnp.maximum(s2 * inv_c - mu * mu, 0.0)    # biased var; clamp keeps rsqrt finite
    inv = jax.lax.rsqrt(var + _EPS)                 # (TB, 1, T), broadcast over C
    # BiasFree: scale only, no mean subtraction. w_ref is (1, C, 1), f32.
    o_ref[...] = (x * inv * w_ref[...]).astype(o_ref.dtype)


@functools.lru_cache(maxsize=1)
def _chip_info():
    """(vmem_capacity_bytes, tensorcores_per_chip) with conservative fallbacks."""
    vmem = None
    try:
        info = pltpu.get_tpu_info()
        vmem = getattr(info, "vmem_capacity_bytes", None)
    except Exception:
        vmem = None
    if not vmem:
        vmem = 64 * _MIB                     # conservative (v7x-sized) fallback
    vmem = int(vmem)
    # v7x: 64 MiB VMEM per TensorCore, 2 TCs/chip.  v5e/v6e: 128 MiB, 1 TC.
    num_cores = 2 if vmem <= 64 * _MIB else 1
    return vmem, num_cores


def _ceil(a, d):
    return (a + d - 1) // d


def _plan(b, c, hw, itemsize):
    """Pick (tile_b, tile_hw, vmem_limit_bytes) from shape + chip generation."""
    vmem_cap, num_cores = _chip_info()
    if vmem_cap >= 100 * _MIB:               # v5e / v6e: 128 MiB physical VMEM
        vmem_limit = 96 * _MIB
    else:                                    # v7x: 64 MiB per TensorCore
        vmem_limit = min(48 * _MIB, max(32 * _MIB, vmem_cap - 16 * _MIB))

    # Bytes one (batch, lane) column costs while resident in the pipeline:
    #   input block, double-buffered  : 2 * c * itemsize
    #   output block, double-buffered : 2 * c * itemsize
    #   in-kernel f32 working set     : ~2 * c * 4   (x upcast, x*x / result)
    per_col = 4 * c * itemsize + 8 * c
    usable = vmem_limit - 8 * _MIB           # headroom for scalars / epilogue
    cols_budget = max(128, usable // per_col)

    if hw <= cols_budget:
        # Small spatial extent: keep hw whole (full dim is always a legal
        # block) and batch several rows per grid step for multi-MiB DMAs.
        tile_hw = hw
        tile_b = max(1, min(b, cols_budget // max(1, hw)))
    else:
        tile_b = 1
        tile_hw = max(128, min(cols_budget, hw, _MAX_TILE_HW) // 128 * 128)

    # Megacore balance (v7x): aim for >= 2 blocks per TensorCore.
    if num_cores > 1:
        target = 2 * num_cores

        def nblocks(tb, thw):
            return _ceil(b, tb) * _ceil(hw, thw)

        if nblocks(tile_b, tile_hw) < target and hw > 128:
            need_hw = _ceil(target, _ceil(b, tile_b))
            t = max(128, (hw // max(1, need_hw)) // 128 * 128)
            tile_hw = min(tile_hw, t)
        if nblocks(tile_b, tile_hw) < target:
            need_b = _ceil(target, _ceil(hw, tile_hw))
            tile_b = min(tile_b, max(1, b // max(1, need_b)))

    return int(tile_b), int(tile_hw), int(vmem_limit)


@functools.partial(jax.jit, static_argnames=("tile_b", "tile_hw", "vmem_limit"))
def _biasfree_ln_call(x_nchw, weight, *, tile_b, tile_hw, vmem_limit):
    b, c, h, w = x_nchw.shape
    hw = h * w
    x3 = x_nchw.reshape(b, c, hw)                    # layout-preserving, free
    w3 = weight.astype(jnp.float32).reshape(1, c, 1)  # cast hoisted out of kernel

    grid = (pl.cdiv(b, tile_b), pl.cdiv(hw, tile_hw))

    # Reduction axis (C) is always full inside a block, so ragged boundary
    # blocks (batch or lane) are safe: garbage columns compute independently,
    # stay finite (var clamped >= 0) and are dropped by the masked store.
    x_spec = pl.BlockSpec((tile_b, c, tile_hw), lambda i, j: (i, 0, j))
    w_spec = pl.BlockSpec((1, c, 1), lambda i, j: (0, 0, 0))  # grid-constant

    itemsize = jnp.dtype(x_nchw.dtype).itemsize
    try:
        cost = pl.CostEstimate(
            flops=int(6 * b * c * hw),
            transcendentals=int(b * hw),
            bytes_accessed=int(2 * b * c * hw * itemsize + c * 4),
        )
    except Exception:
        cost = None

    out3 = pl.pallas_call(
        _biasfree_ln_kernel,
        out_shape=jax.ShapeDtypeStruct((b, c, hw), x_nchw.dtype),
        grid_spec=pltpu.PrefetchScalarGridSpec(
            num_scalar_prefetch=0,
            grid=grid,
            in_specs=[x_spec, w_spec],
            out_specs=x_spec,
        ),
        compiler_params=pltpu.CompilerParams(
            dimension_semantics=("parallel", "parallel"),
            vmem_limit_bytes=vmem_limit,
        ),
        cost_estimate=cost,
    )(x3, w3)
    return out3.reshape(b, c, h, w)


def biasfree_layernorm_pallas(x_nchw, weight):
    b, c, h, w = x_nchw.shape
    tile_b, tile_hw, vmem_limit = _plan(
        b, c, h * w, jnp.dtype(x_nchw.dtype).itemsize)
    return _biasfree_ln_call(x_nchw, weight, tile_b=tile_b, tile_hw=tile_hw,
                             vmem_limit=vmem_limit)


def _reference(x_nchw, weight):
    b, c, h, w = x_nchw.shape
    x3 = jnp.transpose(x_nchw, (0, 2, 3, 1)).reshape(b, h * w, c)
    x3 = x3.astype(jnp.float32)
    var = jnp.var(x3, axis=-1, keepdims=True)        # ddof=0 == unbiased=False
    y = x3 * jax.lax.rsqrt(var + _EPS) * weight.astype(jnp.float32)
    y = y.astype(x_nchw.dtype).reshape(b, h, w, c)
    return jnp.transpose(y, (0, 3, 1, 2))


if __name__ == "__main__":
    key = jax.random.PRNGKey(0)
    k1, k2, k3 = jax.random.split(key, 3)

    # Main case (Restormer-like small shape). weight init matches
    # nn.Parameter(torch.ones(normalized_shape)).
    B, C, H, W = 2, 32, 16, 16
    x = jax.random.normal(k1, (B, C, H, W), dtype=jnp.float32)
    weight = jnp.ones((C,), dtype=jnp.float32)

    out = biasfree_layernorm_pallas(x, weight)
    jax.block_until_ready(out)
    ref = _reference(x, weight)
    assert out.shape == x.shape and out.dtype == x.dtype
    assert jnp.allclose(out, ref, atol=1e-5, rtol=1e-5), \
        float(jnp.max(jnp.abs(out - ref)))

    # Ragged spatial extent (H*W = 143, not a multiple of 128) and a
    # non-trivial weight: exercises the partial-block path.
    B2, C2, H2, W2 = 1, 48, 11, 13
    x2 = jax.random.normal(k2, (B2, C2, H2, W2), dtype=jnp.float32)
    w2 = jax.random.normal(jax.random.PRNGKey(1), (C2,), dtype=jnp.float32)
    out2 = biasfree_layernorm_pallas(x2, w2)
    jax.block_until_ready(out2)
    ref2 = _reference(x2, w2)
    assert jnp.allclose(out2, ref2, atol=1e-5, rtol=1e-5), \
        float(jnp.max(jnp.abs(out2 - ref2)))

    # bf16 input: exercises the f32-working-set-aware tile budget.
    B3, C3, H3, W3 = 1, 64, 32, 20
    x3 = jax.random.normal(k3, (B3, C3, H3, W3), dtype=jnp.bfloat16)
    w3 = jnp.ones((C3,), dtype=jnp.bfloat16)
    out3 = biasfree_layernorm_pallas(x3, w3)
    jax.block_until_ready(out3)
    ref3 = _reference(x3, w3)
    assert jnp.allclose(out3.astype(jnp.float32), ref3.astype(jnp.float32),
                        atol=5e-2, rtol=5e-2), \
        float(jnp.max(jnp.abs(out3.astype(jnp.float32) - ref3.astype(jnp.float32))))

    print("KERNEL_OK")
</pallas_src>

<mosaic_0001>
module attributes {stable_mosaic.version = 11 : i64} {
  func.func @_biasfree_ln_kernel(%arg0: i32, %arg1: i32, %arg2: memref<1x32x128xf32, #tpu.memory_space<vmem>>, %arg3: memref<1x32x1xf32, #tpu.memory_space<vmem>>, %arg4: memref<1x32x128xf32, #tpu.memory_space<vmem>>) attributes {dimension_semantics = [#tpu.dimension_semantics<parallel>, #tpu.dimension_semantics<parallel>], iteration_bounds = array<i64: 2, 2>, scalar_prefetch = 0 : i64, scratch_operands = 0 : i64, tpu.core_type = #tpu.core_type<tc>, window_params = [{transform_indices = @transform_0, window_bounds = array<i64: 1, 32, 128>}, {pipeline_mode = #tpu.pipeline_mode<synchronous>, transform_indices = @transform_1, window_bounds = array<i64: 1, 32, 1>}, {transform_indices = @transform_2, window_bounds = array<i64: 1, 32, 128>}]} {
    %c0 = arith.constant 0 : index
    %c0_0 = arith.constant 0 : index
    %c0_1 = arith.constant 0 : index
    %0 = vector.load %arg2[%c0, %c0_0, %c0_1] : memref<1x32x128xf32, #tpu.memory_space<vmem>>, vector<1x32x128xf32>
    %cst = arith.constant dense<0.000000e+00> : vector<1x128xf32>
    %1 = vector.multi_reduction <add>, %0, %cst [1] : vector<1x32x128xf32> to vector<1x128xf32>
    %2 = vector.shape_cast %1 : vector<1x128xf32> to vector<1x1x128xf32>
    %3 = arith.mulf %0, %0 : vector<1x32x128xf32>
    %cst_2 = arith.constant dense<0.000000e+00> : vector<1x128xf32>
    %4 = vector.multi_reduction <add>, %3, %cst_2 [1] : vector<1x32x128xf32> to vector<1x128xf32>
    %5 = vector.shape_cast %4 : vector<1x128xf32> to vector<1x1x128xf32>
    %cst_3 = arith.constant 3.125000e-02 : f32
    %6 = vector.broadcast %cst_3 : f32 to vector<1x1x128xf32>
    %7 = arith.mulf %2, %6 : vector<1x1x128xf32>
    %cst_4 = arith.constant 3.125000e-02 : f32
    %8 = vector.broadcast %cst_4 : f32 to vector<1x1x128xf32>
    %9 = arith.mulf %5, %8 : vector<1x1x128xf32>
    %10 = arith.mulf %7, %7 : vector<1x1x128xf32>
    %11 = arith.subf %9, %10 : vector<1x1x128xf32>
    %cst_5 = arith.constant 0.000000e+00 : f32
    %12 = vector.broadcast %cst_5 : f32 to vector<1x1x128xf32>
    %13 = arith.maximumf %11, %12 : vector<1x1x128xf32>
    %cst_6 = arith.constant 9.99999974E-6 : f32
    %14 = vector.broadcast %cst_6 : f32 to vector<1x1x128xf32>
    %15 = arith.addf %13, %14 : vector<1x1x128xf32>
    %16 = math.rsqrt %15 : vector<1x1x128xf32>
    %17 = vector.broadcast %16 : vector<1x1x128xf32> to vector<1x32x128xf32>
    %18 = arith.mulf %0, %17 : vector<1x32x128xf32>
    %c0_7 = arith.constant 0 : index
    %c0_8 = arith.constant 0 : index
    %c0_9 = arith.constant 0 : index
    %19 = vector.load %arg3[%c0_7, %c0_8, %c0_9] : memref<1x32x1xf32, #tpu.memory_space<vmem>>, vector<1x32x1xf32>
    %20 = vector.broadcast %19 : vector<1x32x1xf32> to vector<1x32x128xf32>
    %21 = arith.mulf %18, %20 : vector<1x32x128xf32>
    %c0_10 = arith.constant 0 : index
    %c0_11 = arith.constant 0 : index
    %c0_12 = arith.constant 0 : index
    %22 = vector.load %arg4[%c0_10, %c0_11, %c0_12] : memref<1x32x128xf32, #tpu.memory_space<vmem>>, vector<1x32x128xf32>
    tpu.vector_store %arg4[%c0_10, %c0_11, %c0_12], %21 {strides = array<i32>} : memref<1x32x128xf32, #tpu.memory_space<vmem>>, vector<1x32x128xf32>,
    return
  }
  func.func @transform_0(%arg0: i32, %arg1: i32) -> (i32, i32, i32) {
    %c0_i32 = arith.constant 0 : i32
    %c0_i32_0 = arith.constant 0 : i32
    return %arg0, %c0_i32, %arg1 : i32, i32, i32
  }
  func.func @transform_1(%arg0: i32, %arg1: i32) -> (i32, i32, i32) {
    %c0_i32 = arith.constant 0 : i32
    %c0_i32_0 = arith.constant 0 : i32
    %c0_i32_1 = arith.constant 0 : i32
    %c0_i32_2 = arith.constant 0 : i32
    return %c0_i32, %c0_i32_0, %c0_i32_1 : i32, i32, i32
  }
  func.func @transform_2(%arg0: i32, %arg1: i32) -> (i32, i32, i32) {
    %c0_i32 = arith.constant 0 : i32
    %c0_i32_0 = arith.constant 0 : i32
    return %arg0, %c0_i32, %arg1 : i32, i32, i32
  }
}

</mosaic_0001>

<llo_original>
// kernel: _biasfree_ln_call.1
$region0: #{_biasfree_ln_call.1}
  #allocation0 [shape = 'u32[]', space=smem, size = 0x4, offset = 0x4, fixed_abs, tag = 'smem constant byte address 0x4 - core index']
  #allocation1 [shape = 'u32[144,128]{1,0:T(1,128)}', space=vmem, size = 0x12000, scoped, tag = 'internal scratch']
  %s0 = inlined_call_operand.vmem [shape: f32[2,32,256], index: 0, kind: input, shape index: {}]
  %s1 = inlined_call_operand.vmem [shape: f32[1,32,1], index: 1, kind: input, shape index: {}]
  %s2 = inlined_call_operand.vmem [shape: f32[2,32,256], index: 2, kind: output, shape index: {}]
  %s3 = sld [smem:[#allocation0]]
  $region113: #{_biasfree_ln_call.1} parent=0
    _
  %s5 = ssub.s32 1, %s3
  %s6 = scalar_select 0, %s5, %s3
  $region1: #{_biasfree_ln_call.1} parent=0
    #allocation2 [shape = 'u8[32768]{0}', space=vmem, size = 0x8000, scoped, tag = 'input window, operand 0']
    #allocation3 [shape = 'u8[32768]{0}', space=vmem, size = 0x8000, scoped, tag = 'output window, operand 0']
    loop: start=0, step=1, limit=6
    $region2: #{_biasfree_ln_call.1} parent=1 // loop_pre_header
      _
    $region3: #{_biasfree_ln_call.1} parent=1 // loop_header
      %s8 = sphi 0, %s12
      %p9 = scmp.ge.s32.totalorder %s8, 6
      %s15 = sphi 0, %s27
      %s16 = sphi 0, %s23
      %s17 = sphi 0, %s15
      %s18 = sphi 0, %s16
      %s19 = sphi 0, %s17
      %s20 = sphi 0, %s18
      %s32 = sphi 0, %s34
      %s35 = sphi 0, %s32
      %s36 = sphi 0, %s35
      %s52 = sphi 0, %s36
      %s56 = sphi 0, %s56
      %s58 = sphi 0, %s56
      %s59 = sphi 0, %s58
      %s73 = sphi 0, %s59
      %s81 = sphi 0, %s83
      %s84 = sphi 0, %s81
      %s85 = sphi 0, %s84
      %s101 = sphi 0, %s85
    $region4: #{_biasfree_ln_call.1} parent=1 // loop_header_branch
      %11 = sbr.rel (%p9) target = $region8
    $region5: #{_biasfree_ln_call.1} parent=1 // loop_body
      %s13 = ssub.s32 %s8, 1
      %s14 = ssub.s32 %s8, 2
      %s21 = sadd.s32 1, %s16
      %p22 = scmp.ge.s32.totalorder %s21, 2
      %s23 = scalar_select %p22, 0, %s21
      %s24 = sadd.s32 1, %s15
      %s25 = scalar_select %p22, %s24, %s15
      %p26 = scmp.ge.s32.totalorder %s25, 2
      %s27 = scalar_select %p26, 0, %s25
      %s28 = ssub.s32 %s15, %s27
      %s29 = ssub.s32 %s16, %s23
      %s30 = sor.u32 %s28, %s29
      %p31 = scmp.eq.s32.totalorder %s30, 0
      %s33 = sadd.s32 %s32, 1
      %s34 = scalar_select %p31, %s32, %s33
      %p37 = pneg %p31
      %p38 = scmp.eq.s32.totalorder %s8, 3
      %p39 = por %p37, %p38
      %p40 = scmp.ne.s32.totalorder %s32, %s35
      %p41 = scmp.eq.s32.totalorder %s8, 0
      %p42 = por %p40, %p41
      %p43 = scmp.ne.s32.totalorder %s32, %s35
      %p44 = scmp.eq.s32.totalorder %s13, 3
      %p45 = por %p43, %p44
      %p46 = scmp.ne.s32.totalorder %s35, %s36
      %p47 = scmp.eq.s32.totalorder %s13, 0
      %p48 = por %p46, %p47
      %p49 = scmp.ne.s32.totalorder %s35, %s36
      %p50 = scmp.eq.s32.totalorder %s14, 3
      %p51 = por %p49, %p50
      %p53 = scmp.ne.s32.totalorder %s36, %s52
      %p54 = scmp.eq.s32.totalorder %s14, 0
      %p55 = por %p53, %p54
      %s57 = sadd.s32 %s56, 1
      %p60 = scmp.eq.s32.totalorder %s8, 3
      %p61 = scmp.ne.s32.totalorder %s56, %s58
      %p62 = scmp.eq.s32.totalorder %s8, 0
      %p63 = por %p61, %p62
      %p64 = scmp.ne.s32.totalorder %s56, %s58
      %p65 = scmp.eq.s32.totalorder %s13, 3
      %p66 = por %p64, %p65
      %p67 = scmp.ne.s32.totalorder %s58, %s59
      %p68 = scmp.eq.s32.totalorder %s13, 0
      %p69 = por %p67, %p68
      %p70 = scmp.ne.s32.totalorder %s58, %s59
      %p71 = scmp.eq.s32.totalorder %s14, 3
      %p72 = por %p70, %p71
      %p74 = scmp.ne.s32.totalorder %s59, %s73
      %p75 = scmp.eq.s32.totalorder %s14, 0
      %p76 = por %p74, %p75
      %s77 = ssub.s32 %s15, %s27
      %s78 = ssub.s32 %s16, %s23
      %s79 = sor.u32 %s77, %s78
      %p80 = scmp.eq.s32.totalorder %s79, 0
      %s82 = sadd.s32 %s81, 1
      %s83 = scalar_select %p80, %s81, %s82
      %p86 = pneg %p80
      %p87 = scmp.eq.s32.totalorder %s8, 3
      %p88 = por %p86, %p87
      %p89 = scmp.ne.s32.totalorder %s81, %s84
      %p90 = scmp.eq.s32.totalorder %s8, 0
      %p91 = por %p89, %p90
      %p92 = scmp.ne.s32.totalorder %s81, %s84
      %p93 = scmp.eq.s32.totalorder %s13, 3
      %p94 = por %p92, %p93
      %p95 = scmp.ne.s32.totalorder %s84, %s85
      %p96 = scmp.eq.s32.totalorder %s13, 0
      %p97 = por %p95, %p96
      %p98 = scmp.ne.s32.totalorder %s84, %s85
      %p99 = scmp.eq.s32.totalorder %s14, 3
      %p100 = por %p98, %p99
      %p102 = scmp.ne.s32.totalorder %s85, %s101
      %p103 = scmp.eq.s32.totalorder %s14, 0
      %p104 = por %p102, %p103
      %p105 = scmp.le.s32.totalorder 1, %s8
      %p106 = scmp.lt.s32.totalorder %s8, 5
      %p107 = pnand %p105, %p106
      %p108 = pneg %p107
      // Predicated region
      $region9: #{_biasfree_ln_call.1} parent=5 // pred_check
        _
      $region10: #{_biasfree_ln_call.1} parent=5 // pred_check_branch
        %110 = sbr.rel (%p107) target = $region12
      $region11: #{_biasfree_ln_call.1} parent=5 // pred_region
        %s111 = ssub.s32 %s8, 1
        // Predicated region
        $region13: #{_biasfree_ln_call.1} parent=11 // pred_check
          %p112 = pneg %p69
        $region14: #{_biasfree_ln_call.1} parent=11 // pred_check_branch
          %114 = sbr.rel (%p112) target = $region16
        $region15: #{_biasfree_ln_call.1} parent=11 // pred_region
          _
        $region16: #{_biasfree_ln_call.1} parent=11 // pred_fallthru
          _
      $region12: #{_biasfree_ln_call.1} parent=5 // pred_fallthru
        _
      %p115 = scmp.lt.s32.totalorder %s8, 4
      // Predicated region
      $region17: #{_biasfree_ln_call.1} parent=5 // pred_check
        %p116 = pneg %p115
      $region18: #{_biasfree_ln_call.1} parent=5 // pred_check_branch
        %118 = sbr.rel (%p116) target = $region20
      $region19: #{_biasfree_ln_call.1} parent=5 // pred_region
        // Predicated region
        $region21: #{_biasfree_ln_call.1} parent=19 // pred_check
          %p119 = pneg %p42
        $region22: #{_biasfree_ln_call.1} parent=19 // pred_check_branch
          %121 = sbr.rel (%p119) target = $region24
        $region23: #{_biasfree_ln_call.1} parent=19 // pred_region
          %s122 = sand.u32 %s32, 1
          %s123 = sand.u32 %s32, 1
          %s124 = smul.addr %s123, 32
          %s125 = scalar_lea.vmem [#allocation2], %s124
          %s126 = smul.addr %s15, 8
          %s127 = sadd.s32 %s16, %s126
          %s128 = smul.addr %s127, 8
          %s129 = scalar_lea.vmem %s0, %s128
          // Predicated region
          $region25: #{_biasfree_ln_call.1} parent=23 // pred_check
            _
          $region26: #{_biasfree_ln_call.1} parent=23 // pred_check_branch
            %131 = sbr.rel (0) target = $region28
          $region27: #{_biasfree_ln_call.1} parent=23 // pred_region
            // Predicated region
            $region29: #{_biasfree_ln_call.1} parent=27 // pred_check
              _
            $region30: #{_biasfree_ln_call.1} parent=27 // pred_check_branch
              %133 = sbr.rel (0) target = $region32
            $region31: #{_biasfree_ln_call.1} parent=27 // pred_region
              // Predicated region
              $region44: #{_biasfree_ln_call.1} parent=31 // pred_check
                _
              $region45: #{_biasfree_ln_call.1} parent=31 // pred_check_branch
                %155 = sbr.rel (0) target = $region47
              $region46: #{_biasfree_ln_call.1} parent=31 // pred_region
                loop: start=0, step=1, limit=1
                $region48: #{_biasfree_ln_call.1} parent=46 // loop_pre_header
                  _
                $region49: #{_biasfree_ln_call.1} parent=46 // loop_header
                  %s157 = sphi 0, %s161
                  %p158 = scmp.ge.s32.totalorder %s157, 1
                  %s162 = sphi %s129, %s129
                  %s163 = sphi %s125, %s125
                $region50: #{_biasfree_ln_call.1} parent=46 // loop_header_branch
                  %160 = sbr.rel (%p158) target = $region54
                $region51: #{_biasfree_ln_call.1} parent=46 // loop_body
                  %v164 = vld [vmem:[%s162] sm:$0xff]
                  %165 = vst [vmem:[%s163] sm:$0xff] %v164
                  %v166 = vld [vmem:[%s162 + $0x10] sm:$0xff]
                  %167 = vst [vmem:[%s163 + $0x8] sm:$0xff] %v166
                  %v168 = vld [vmem:[%s162 + $0x20] sm:$0xff]
                  %169 = vst [vmem:[%s163 + $0x10] sm:$0xff] %v168
                  %v170 = vld [vmem:[%s162 + $0x30] sm:$0xff]
                  %171 = vst [vmem:[%s163 + $0x18] sm:$0xff] %v170
                $region52: #{_biasfree_ln_call.1} parent=46 // loop_footer
                  %s161 = sadd.s32 1, %s157
                $region53: #{_biasfree_ln_call.1} parent=46 // loop_footer_branch
                  %156 = sbr.rel target = $region49
                $region54: #{_biasfree_ln_call.1} parent=46 // loop_exit
                  _
              $region47: #{_biasfree_ln_call.1} parent=31 // pred_fallthru
                _
              // Predicated region
              $region55: #{_biasfree_ln_call.1} parent=31 // pred_check
                _
              $region56: #{_biasfree_ln_call.1} parent=31 // pred_check_branch
                %173 = sbr.rel target = $region58
              $region57: #{_biasfree_ln_call.1} parent=31 // pred_region
                _
              $region58: #{_biasfree_ln_call.1} parent=31 // pred_fallthru
                _
            $region32: #{_biasfree_ln_call.1} parent=27 // pred_fallthru
              _
            // Predicated region
            $region33: #{_biasfree_ln_call.1} parent=27 // pred_check
              _
            $region34: #{_biasfree_ln_call.1} parent=27 // pred_check_branch
              %135 = sbr.rel target = $region36
            $region35: #{_biasfree_ln_call.1} parent=27 // pred_region
              %s137 = ssub.s32 256, 1
              loop: start=0, step=1, limit=1
              $region37: #{_biasfree_ln_call.1} parent=35 // loop_pre_header
                _
              $region38: #{_biasfree_ln_call.1} parent=35 // loop_header
                %s139 = sphi 0, %s143
                %p140 = scmp.ge.s32.totalorder %s139, 1
                %s144 = sphi %s129, %s129
                %s145 = sphi %s125, %s125
              $region39: #{_biasfree_ln_call.1} parent=35 // loop_header_branch
                %142 = sbr.rel (%p140) target = $region43
              $region40: #{_biasfree_ln_call.1} parent=35 // loop_body
                %v146 = vld [vmem:[%s144] sm:%s137]
                %147 = vst [vmem:[%s145] sm:%s137] %v146
                %v148 = vld [vmem:[%s144 + $0x10] sm:%s137]
                %149 = vst [vmem:[%s145 + $0x8] sm:%s137] %v148
                %v150 = vld [vmem:[%s144 + $0x20] sm:%s137]
                %151 = vst [vmem:[%s145 + $0x10] sm:%s137] %v150
                %v152 = vld [vmem:[%s144 + $0x30] sm:%s137]
                %153 = vst [vmem:[%s145 + $0x18] sm:%s137] %v152
              $region41: #{_biasfree_ln_call.1} parent=35 // loop_footer
                %s143 = sadd.s32 1, %s139
              $region42: #{_biasfree_ln_call.1} parent=35 // loop_footer_branch
                %138 = sbr.rel target = $region38
              $region43: #{_biasfree_ln_call.1} parent=35 // loop_exit
                _
            $region36: #{_biasfree_ln_call.1} parent=27 // pred_fallthru
              _
          $region28: #{_biasfree_ln_call.1} parent=23 // pred_fallthru
            _
          %174 = vnop
        $region24: #{_biasfree_ln_call.1} parent=19 // pred_fallthru
          _
      $region20: #{_biasfree_ln_call.1} parent=5 // pred_fallthru
        _
      %p175 = scmp.le.s32.totalorder 1, %s8
      %p176 = scmp.lt.s32.totalorder %s8, 5
      %p177 = pnand %p175, %p176
      %p178 = pneg %p177
      // Predicated region
      $region59: #{_biasfree_ln_call.1} parent=5 // pred_check
        _
      $region60: #{_biasfree_ln_call.1} parent=5 // pred_check_branch
        %180 = sbr.rel (%p177) target = $region62
      $region61: #{_biasfree_ln_call.1} parent=5 // pred_region
        %s181 = ssub.s32 %s8, 1
        %s182 = sand.u32 %s35, 1
        %s183 = sand.u32 %s35, 1
        %s184 = smul.addr %s183, 32
        %s185 = scalar_lea.vmem [#allocation2], %s184
        // Predicated region
        $region63: #{_biasfree_ln_call.1} parent=61 // pred_check
          %p186 = pneg %p48
        $region64: #{_biasfree_ln_call.1} parent=61 // pred_check_branch
          %188 = sbr.rel (%p186) target = $region66
        $region65: #{_biasfree_ln_call.1} parent=61 // pred_region
          _
        $region66: #{_biasfree_ln_call.1} parent=61 // pred_fallthru
          _
        %s189 = sand.u32 %s35, 1
        %s190 = sand.u32 %s35, 1
        %s191 = smul.addr %s190, 32
        %s192 = scalar_lea.vmem [#allocation2], %s191
        %p193 = pneg %p48
        %p194 = pneg %p45
        %p195 = pneg %p69
        %p196 = pneg %p66
        %p197 = pneg %p97
        %p198 = pneg %p94
        %s199 = sand.u32 %s84, 1
        %s200 = sand.u32 %s84, 1
        %s201 = smul.addr %s200, 32
        %s202 = scalar_lea.vmem [#allocation3], %s201
        %v203 = vld [vmem:[%s185] sm:$0xff]
        %v204 = vld [vmem:[%s185 + $0x8] sm:$0xff]
        %v205 = vld [vmem:[%s185 + $0x10] sm:$0xff]
        %v206 = vld [vmem:[%s185 + $0x18] sm:$0xff]
        %v207 = vadd.f32 %v203, %v204
        %v208 = vadd.f32 %v207, %v205
        %v209 = vadd.f32 %v208, %v206
        %v210 = vrot.slane %v209, 4
        %v211 = vadd.f32 %v209, %v210
        %v212 = vrot.slane %v211, 2
        %v213 = vadd.f32 %v211, %v212
        %v214 = vrot.slane %v213, 1
        %v215 = vadd.f32 %v213, %v214
        %v216 = vmul.f32 %v203, %v203
        %v217 = vmul.f32 %v204, %v204
        %v218 = vmul.f32 %v205, %v205
        %v219 = vmul.f32 %v206, %v206
        %v220 = vadd.f32 %v216, %v217
        %v221 = vadd.f32 %v220, %v218
        %v222 = vadd.f32 %v221, %v219
        %v223 = vrot.slane %v222, 4
        %v224 = vadd.f32 %v222, %v223
        %v225 = vrot.slane %v224, 2
        %v226 = vadd.f32 %v224, %v225
        %v227 = vrot.slane %v226, 1
        %v228 = vadd.f32 %v226, %v227
        %v229 = vmul.f32 %v215, 0.03125
        %v230 = vmul.f32 %v228, 0.03125
        %v231 = vmul.f32 %v229, %v229
        %v232 = vsub.f32 %v230, %v231
        %v233 = vmax.f32 %v232, 0.0
        %v234 = vadd.f32 %v233, 1e-05
        %v235 = vrsqrt.pop %v234
        %v236 = vmul.f32 %v203, %v235
        %v237 = vmul.f32 %v204, %v235
        %v238 = vmul.f32 %v205, %v235
        %v239 = vmul.f32 %v206, %v235
        %v240 = vld [vmem:[%s1] sm:$0xff]
        %v241 = vld [vmem:[%s1 + $0x8] sm:$0xff]
        %v242 = vld [vmem:[%s1 + $0x10] sm:$0xff]
        %v243 = vld [vmem:[%s1 + $0x18] sm:$0xff]
        %245 = vset.pattern.permute.xlu0 0
        %246 = vperm.xlu0 %245, %v240
        %v247 = vpop.permute.xlu0 %246
        %250 = vset.pattern.permute.xlu0 0
        %251 = vperm.xlu0 %250, %v241
        %v252 = vpop.permute.xlu0 %251
        %255 = vset.pattern.permute.xlu0 0
        %256 = vperm.xlu0 %255, %v242
        %v257 = vpop.permute.xlu0 %256
        %260 = vset.pattern.permute.xlu0 0
        %261 = vperm.xlu0 %260, %v243
        %v262 = vpop.permute.xlu0 %261
        %v264 = vmul.f32 %v236, %v247
        %v265 = vmul.f32 %v237, %v252
        %v266 = vmul.f32 %v238, %v257
        %v267 = vmul.f32 %v239, %v262
        %268 = vst [vmem:[%s202] sm:$0xff] %v264
        %269 = vst [vmem:[%s202 + $0x8] sm:$0xff] %v265
        %270 = vst [vmem:[%s202 + $0x10] sm:$0xff] %v266
        %271 = vst [vmem:[%s202 + $0x18] sm:$0xff] %v267
        %s272 = sand.u32 %s84, 1
        %s273 = sand.u32 %s84, 1
        %s274 = smul.addr %s273, 32
        %s275 = scalar_lea.vmem [#allocation3], %s274
        // Predicated region
        $region67: #{_biasfree_ln_call.1} parent=61 // pred_check
          %p276 = pneg %p94
        $region68: #{_biasfree_ln_call.1} parent=61 // pred_check_branch
          %278 = sbr.rel (%p276) target = $region70
        $region69: #{_biasfree_ln_call.1} parent=61 // pred_region
          %s279 = smul.addr %s17, 8
          %s280 = sadd.s32 %s18, %s279
          %s281 = smul.addr %s280, 8
          %s282 = scalar_lea.vmem %s2, %s281
          // Predicated region
          $region71: #{_biasfree_ln_call.1} parent=69 // pred_check
            _
          $region72: #{_biasfree_ln_call.1} parent=69 // pred_check_branch
            %284 = sbr.rel (0) target = $region74
          $region73: #{_biasfree_ln_call.1} parent=69 // pred_region
            // Predicated region
            $region75: #{_biasfree_ln_call.1} parent=73 // pred_check
              _
            $region76: #{_biasfree_ln_call.1} parent=73 // pred_check_branch
              %286 = sbr.rel (0) target = $region78
            $region77: #{_biasfree_ln_call.1} parent=73 // pred_region
              // Predicated region
              $region90: #{_biasfree_ln_call.1} parent=77 // pred_check
                _
              $region91: #{_biasfree_ln_call.1} parent=77 // pred_check_branch
                %308 = sbr.rel (0) target = $region93
              $region92: #{_biasfree_ln_call.1} parent=77 // pred_region
                loop: start=0, step=1, limit=1
                $region94: #{_biasfree_ln_call.1} parent=92 // loop_pre_header
                  _
                $region95: #{_biasfree_ln_call.1} parent=92 // loop_header
                  %s310 = sphi 0, %s314
                  %p311 = scmp.ge.s32.totalorder %s310, 1
                  %s315 = sphi %s275, %s275
                  %s316 = sphi %s282, %s282
                $region96: #{_biasfree_ln_call.1} parent=92 // loop_header_branch
                  %313 = sbr.rel (%p311) target = $region100
                $region97: #{_biasfree_ln_call.1} parent=92 // loop_body
                  %v317 = vld [vmem:[%s315] sm:$0xff]
                  %318 = vst [vmem:[%s316] sm:$0xff] %v317
                  %v319 = vld [vmem:[%s315 + $0x8] sm:$0xff]
                  %320 = vst [vmem:[%s316 + $0x10] sm:$0xff] %v319
                  %v321 = vld [vmem:[%s315 + $0x10] sm:$0xff]
                  %322 = vst [vmem:[%s316 + $0x20] sm:$0xff] %v321
                  %v323 = vld [vmem:[%s315 + $0x18] sm:$0xff]
                  %324 = vst [vmem:[%s316 + $0x30] sm:$0xff] %v323
                $region98: #{_biasfree_ln_call.1} parent=92 // loop_footer
                  %s314 = sadd.s32 1, %s310
                $region99: #{_biasfree_ln_call.1} parent=92 // loop_footer_branch
                  %309 = sbr.rel target = $region95
                $region100: #{_biasfree_ln_call.1} parent=92 // loop_exit
                  _
              $region93: #{_biasfree_ln_call.1} parent=77 // pred_fallthru
                _
              // Predicated region
              $region101: #{_biasfree_ln_call.1} parent=77 // pred_check
                _
              $region102: #{_biasfree_ln_call.1} parent=77 // pred_check_branch
                %326 = sbr.rel target = $region104
              $region103: #{_biasfree_ln_call.1} parent=77 // pred_region
                _
              $region104: #{_biasfree_ln_call.1} parent=77 // pred_fallthru
                _
            $region78: #{_biasfree_ln_call.1} parent=73 // pred_fallthru
              _
            // Predicated region
            $region79: #{_biasfree_ln_call.1} parent=73 // pred_check
              _
            $region80: #{_biasfree_ln_call.1} parent=73 // pred_check_branch
              %288 = sbr.rel target = $region82
            $region81: #{_biasfree_ln_call.1} parent=73 // pred_region
              %s290 = ssub.s32 256, 1
              loop: start=0, step=1, limit=1
              $region83: #{_biasfree_ln_call.1} parent=81 // loop_pre_header
                _
              $region84: #{_biasfree_ln_call.1} parent=81 // loop_header
                %s292 = sphi 0, %s296
                %p293 = scmp.ge.s32.totalorder %s292, 1
                %s297 = sphi %s275, %s275
                %s298 = sphi %s282, %s282
              $region85: #{_biasfree_ln_call.1} parent=81 // loop_header_branch
                %295 = sbr.rel (%p293) target = $region89
              $region86: #{_biasfree_ln_call.1} parent=81 // loop_body
                %v299 = vld [vmem:[%s297] sm:%s290]
                %300 = vst [vmem:[%s298] sm:%s290] %v299
                %v301 = vld [vmem:[%s297 + $0x8] sm:%s290]
                %302 = vst [vmem:[%s298 + $0x10] sm:%s290] %v301
                %v303 = vld [vmem:[%s297 + $0x10] sm:%s290]
                %304 = vst [vmem:[%s298 + $0x20] sm:%s290] %v303
                %v305 = vld [vmem:[%s297 + $0x18] sm:%s290]
                %306 = vst [vmem:[%s298 + $0x30] sm:%s290] %v305
              $region87: #{_biasfree_ln_call.1} parent=81 // loop_footer
                %s296 = sadd.s32 1, %s292
              $region88: #{_biasfree_ln_call.1} parent=81 // loop_footer_branch
                %291 = sbr.rel target = $region84
              $region89: #{_biasfree_ln_call.1} parent=81 // loop_exit
                _
            $region82: #{_biasfree_ln_call.1} parent=73 // pred_fallthru
              _
          $region74: #{_biasfree_ln_call.1} parent=69 // pred_fallthru
            _
          %327 = vnop
        $region70: #{_biasfree_ln_call.1} parent=61 // pred_fallthru
          _
      $region62: #{_biasfree_ln_call.1} parent=5 // pred_fallthru
        _
      %p328 = scmp.le.s32.totalorder 2, %s8
      // Predicated region
      $region105: #{_biasfree_ln_call.1} parent=5 // pred_check
        %p329 = pneg %p328
      $region106: #{_biasfree_ln_call.1} parent=5 // pred_check_branch
        %331 = sbr.rel (%p329) target = $region108
      $region107: #{_biasfree_ln_call.1} parent=5 // pred_region
        %s332 = ssub.s32 %s8, 2
        // Predicated region
        $region109: #{_biasfree_ln_call.1} parent=107 // pred_check
          %p333 = pneg %p100
        $region110: #{_biasfree_ln_call.1} parent=107 // pred_check_branch
          %335 = sbr.rel (%p333) target = $region112
        $region111: #{_biasfree_ln_call.1} parent=107 // pred_region
          %s336 = sand.u32 %s85, 1
          %s337 = sand.u32 %s85, 1
          %s338 = smul.addr %s337, 32
          %s339 = scalar_lea.vmem [#allocation3], %s338
        $region112: #{_biasfree_ln_call.1} parent=107 // pred_fallthru
          _
      $region108: #{_biasfree_ln_call.1} parent=5 // pred_fallthru
        _
    $region6: #{_biasfree_ln_call.1} parent=1 // loop_footer
      %s12 = sadd.s32 1, %s8
    $region7: #{_biasfree_ln_call.1} parent=1 // loop_footer_branch
      %7 = sbr.rel target = $region3
    $region8: #{_biasfree_ln_call.1} parent=1 // loop_exit
      _

</llo_original>
